<compile_context>
chip_gen: v6e
topology: v6e:2x2x1
jax: 0.10.0
libtpu: 0.0.40
codegen_flags: <defaults>
</compile_context>

<pallas_src>
import jax
import jax.numpy as jnp
from jax import lax
from jax.experimental import pallas as pl
from jax.experimental.pallas import tpu as pltpu


# ---------------------------------------------------------------------------
# Kernels
# ---------------------------------------------------------------------------

def _pooler_kernel_fullk(x_ref, w_ref, b_ref, o_ref):
    """One n-step of  y = tanh(x @ W^T + b)  with the full reduction inline.

    x_ref: [B,  D]   first-token activations (resident)
    w_ref: [tn, D]   nn.Linear weight rows (out_features, in_features)
    b_ref: [1,  tn]  bias tile
    o_ref: [B,  tn]  output tile
    """
    y = lax.dot_general(
        x_ref[...],
        w_ref[...],
        dimension_numbers=(((1,), (1,)), ((), ())),   # contract last dims
        preferred_element_type=jnp.float32,           # f32 MXU accumulation
    )
    y = y + b_ref[...].astype(jnp.float32)
    o_ref[...] = jnp.tanh(y).astype(o_ref.dtype)      # EUP tanh, lane-dense store


def _pooler_kernel_ktiled(x_ref, w_ref, b_ref, o_ref, acc_ref):
    """Fallback (n, k) grid step with a VMEM f32 accumulator across k.

    x_ref:   [B,  tk]   K tile of the first-token activations
    w_ref:   [tn, tk]   weight tile
    b_ref:   [1,  tn]   bias tile
    o_ref:   [B,  tn]   output tile
    acc_ref: [B,  tn]   f32 accumulator (persists across the k axis)
    """
    k = pl.program_id(1)

    @pl.when(k == 0)
    def _():
        acc_ref[...] = jnp.zeros_like(acc_ref)

    acc_ref[...] += lax.dot_general(
        x_ref[...],
        w_ref[...],
        dimension_numbers=(((1,), (1,)), ((), ())),
        preferred_element_type=jnp.float32,
    )

    @pl.when(k == pl.num_programs(1) - 1)
    def _():
        y = acc_ref[...] + b_ref[...].astype(jnp.float32)
        o_ref[...] = jnp.tanh(y).astype(o_ref.dtype)


# ---------------------------------------------------------------------------
# Tile selection
# ---------------------------------------------------------------------------

_DEFAULT_VMEM_BUDGET = 48 * 1024 * 1024   # safe under v7x's 64 MiB per TC


def _pick_tn_fullk(D, itemsize, weight_budget_bytes):
    """Output-feature tile for the full-K path, or None if it can't fit.

    Preference: (1) tn = D/2 (even 2-step parallel grid -> both v7x TCs stream
    weights), (2) tn = D (single block, small d_model), (3) the largest
    128-multiple divisor of D whose double-buffered (tn, D) tile fits.
    """
    def fits(t):
        return 2 * t * D * itemsize <= weight_budget_bytes

    half = D // 2
    if D % 256 == 0 and fits(half):
        return half
    if fits(D):
        return D
    if D % 128 != 0:
        return None
    best, t = None, 128
    while t <= D:
        if D % t == 0 and fits(t):
            best = t
        t *= 2
    return best


# ---------------------------------------------------------------------------
# Wrapper
# ---------------------------------------------------------------------------

def pooler(x, weight, bias, *, tile_n=None, tile_k=None,
           vmem_budget_bytes=_DEFAULT_VMEM_BUDGET):
    """Pooler forward: tanh(Linear(x[:, 0])).

    x:      [B, S, D]
    weight: [D, D]   PyTorch nn.Linear layout (out_features, in_features);
                     may be bf16 to halve the dominant HBM weight traffic.
    bias:   [D]
    returns [B, D]   (dtype of x)
    """
    B, S, D = x.shape
    assert weight.shape == (D, D) and bias.shape == (D,)

    # The first-token slice is a tiny [B, D] strided copy next to the D^2
    # weight stream; keep it in the wrapper so every BlockSpec stays simple.
    x0 = x[:, 0, :]
    b2d = bias.reshape(1, D)

    w_item = jnp.dtype(weight.dtype).itemsize
    out_dtype = x.dtype
    cost = pl.CostEstimate(
        flops=2 * B * D * D,
        transcendentals=B * D,
        bytes_accessed=(D * D * w_item
                        + B * D * jnp.dtype(x0.dtype).itemsize
                        + D * jnp.dtype(bias.dtype).itemsize
                        + B * D * jnp.dtype(out_dtype).itemsize),
    )
    # ~2/3 of the budget for the double-buffered weight stream; the rest is
    # headroom for x0, bias, output and compiler scratch.
    weight_budget = (vmem_budget_bytes * 2) // 3
    vmem_limit = int(vmem_budget_bytes)

    force_ktiled = tile_k is not None and tile_k < D

    if not force_ktiled:
        tn = tile_n if tile_n is not None else _pick_tn_fullk(D, w_item, weight_budget)
        if tn is not None:
            assert D % tn == 0, "tile_n must divide d_model"
            grid = (D // tn,)
            return pl.pallas_call(
                _pooler_kernel_fullk,
                out_shape=jax.ShapeDtypeStruct((B, D), out_dtype),
                grid_spec=pltpu.PrefetchScalarGridSpec(
                    num_scalar_prefetch=0,
                    grid=grid,
                    in_specs=[
                        pl.BlockSpec((B, D), lambda n: (0, 0)),     # x0, resident
                        pl.BlockSpec((tn, D), lambda n: (n, 0)),    # full-K weight rows
                        pl.BlockSpec((1, tn), lambda n: (0, n)),    # bias N tile
                    ],
                    out_specs=pl.BlockSpec((B, tn), lambda n: (0, n)),
                ),
                compiler_params=pltpu.CompilerParams(
                    dimension_semantics=("parallel",),
                    vmem_limit_bytes=vmem_limit,
                ),
                cost_estimate=cost,
            )(x0, weight, b2d)

    # ---- Fallback: k-tiled accumulator grid (huge D, or caller-forced) ----
    tn = tile_n if tile_n is not None else (128 if D % 128 == 0 else D)
    tk = tile_k if tile_k is not None else (128 if D % 128 == 0 else D)
    assert D % tn == 0 and D % tk == 0, "tiles must divide d_model"
    grid = (D // tn, D // tk)   # reduction axis last

    return pl.pallas_call(
        _pooler_kernel_ktiled,
        out_shape=jax.ShapeDtypeStruct((B, D), out_dtype),
        grid_spec=pltpu.PrefetchScalarGridSpec(
            num_scalar_prefetch=0,
            grid=grid,
            in_specs=[
                pl.BlockSpec((B, tk), lambda n, k: (0, k)),    # x0 K tile
                pl.BlockSpec((tn, tk), lambda n, k: (n, k)),   # weight stream
                pl.BlockSpec((1, tn), lambda n, k: (0, n)),    # bias N tile
            ],
            out_specs=pl.BlockSpec((B, tn), lambda n, k: (0, n)),
            scratch_shapes=[pltpu.VMEM((B, tn), jnp.float32)],
        ),
        compiler_params=pltpu.CompilerParams(
            dimension_semantics=("parallel", "arbitrary"),
            vmem_limit_bytes=vmem_limit,
        ),
        cost_estimate=cost,
    )(x0, weight, b2d)


def reference(x, weight, bias):
    # Pure-JAX reference of the PyTorch forward pass (full-precision matmul).
    y = lax.dot_general(
        x[:, 0, :], weight,
        dimension_numbers=(((1,), (1,)), ((), ())),
        precision=lax.Precision.HIGHEST,
    )
    return jnp.tanh(y + bias)


if __name__ == "__main__":
    keys = jax.random.split(jax.random.PRNGKey(0), 4)

    def make_inputs(B, S, D, kx, kw):
        x = jax.random.normal(kx, (B, S, D), dtype=jnp.float32)
        # Deterministic parameter init matching __init__:
        #   weight.data.normal_() -> standard normal ; bias.data.zero_() -> 0
        weight = jax.random.normal(kw, (D, D), dtype=jnp.float32)
        bias = jnp.zeros((D,), dtype=jnp.float32)
        return x, weight, bias

    # 1) Small shape implied by the module (batch=2, seq=8, d_model=32):
    #    single full-K block, grid (1,).
    x, w, b = make_inputs(2, 8, 32, keys[0], keys[1])
    out = jax.block_until_ready(pooler(x, w, b))
    ref = reference(x, w, b)
    assert out.shape == (2, 32), f"bad shape {out.shape}"
    assert jnp.allclose(out, ref, atol=1e-4, rtol=1e-4), "mismatch vs reference (D=32)"

    # 2) d_model=256: full-K path with tn=128 -> even 2-step parallel grid
    #    (both v7x TensorCores stream weights; negligible extra cost elsewhere).
    x, w, b = make_inputs(2, 8, 256, keys[2], keys[3])
    out = jax.block_until_ready(pooler(x, w, b))
    ref = reference(x, w, b)
    assert out.shape == (2, 256), f"bad shape {out.shape}"
    assert jnp.allclose(out, ref, atol=1e-4, rtol=1e-4), "mismatch vs reference (D=256, full-K)"

    # 3) Same inputs through the k-tiled accumulator fallback (forced) to keep
    #    that path exercised and correct.
    out = jax.block_until_ready(pooler(x, w, b, tile_n=128, tile_k=128))
    assert jnp.allclose(out, ref, atol=1e-4, rtol=1e-4), "mismatch vs reference (D=256, k-tiled)"

    print("KERNEL_OK")
</pallas_src>

<mosaic_0001>
module attributes {stable_mosaic.version = 11 : i64} {
  func.func @_pooler_kernel_fullk(%arg0: i32, %arg1: memref<2x32xf32, #tpu.memory_space<vmem>>, %arg2: memref<32x32xf32, #tpu.memory_space<vmem>>, %arg3: memref<1x32xf32, #tpu.memory_space<vmem>>, %arg4: memref<2x32xf32, #tpu.memory_space<vmem>>) attributes {dimension_semantics = [#tpu.dimension_semantics<parallel>], iteration_bounds = array<i64: 1>, scalar_prefetch = 0 : i64, scratch_operands = 0 : i64, tpu.core_type = #tpu.core_type<tc>, window_params = [{pipeline_mode = #tpu.pipeline_mode<synchronous>, transform_indices = @transform_0, window_bounds = array<i64: 2, 32>}, {transform_indices = @transform_1, window_bounds = array<i64: 32, 32>}, {transform_indices = @transform_2, window_bounds = array<i64: 1, 32>}, {transform_indices = @transform_3, window_bounds = array<i64: 2, 32>}]} {
    %c0 = arith.constant 0 : index
    %c0_0 = arith.constant 0 : index
    %0 = vector.load %arg1[%c0, %c0_0] : memref<2x32xf32, #tpu.memory_space<vmem>>, vector<2x32xf32>
    %c0_1 = arith.constant 0 : index
    %c0_2 = arith.constant 0 : index
    %1 = vector.load %arg2[%c0_1, %c0_2] : memref<32x32xf32, #tpu.memory_space<vmem>>, vector<32x32xf32>
    %cst = arith.constant dense<0.000000e+00> : vector<2x32xf32>
    %2 = tpu.matmul %0, %1, %cst {dimension_numbers = #tpu.dot_dimension_numbers<[1], [1], [0], [0], [0, 0, 1, 0], [], []>} : vector<2x32xf32>, vector<32x32xf32>, vector<2x32xf32> -> vector<2x32xf32>
    %c0_3 = arith.constant 0 : index
    %c0_4 = arith.constant 0 : index
    %3 = vector.load %arg3[%c0_3, %c0_4] : memref<1x32xf32, #tpu.memory_space<vmem>>, vector<1x32xf32>
    %4 = vector.broadcast %3 : vector<1x32xf32> to vector<2x32xf32>
    %5 = arith.addf %2, %4 : vector<2x32xf32>
    %6 = math.tanh %5 : vector<2x32xf32>
    %c0_5 = arith.constant 0 : index
    %c0_6 = arith.constant 0 : index
    %7 = vector.load %arg4[%c0_5, %c0_6] : memref<2x32xf32, #tpu.memory_space<vmem>>, vector<2x32xf32>
    tpu.vector_store %arg4[%c0_5, %c0_6], %6 {strides = array<i32>} : memref<2x32xf32, #tpu.memory_space<vmem>>, vector<2x32xf32>,
    return
  }
  func.func @transform_0(%arg0: i32) -> (i32, i32) {
    %c0_i32 = arith.constant 0 : i32
    %c0_i32_0 = arith.constant 0 : i32
    %c0_i32_1 = arith.constant 0 : i32
    return %c0_i32, %c0_i32_0 : i32, i32
  }
  func.func @transform_1(%arg0: i32) -> (i32, i32) {
    %c0_i32 = arith.constant 0 : i32
    %c0_i32_0 = arith.constant 0 : i32
    return %arg0, %c0_i32 : i32, i32
  }
  func.func @transform_2(%arg0: i32) -> (i32, i32) {
    %c0_i32 = arith.constant 0 : i32
    %c0_i32_0 = arith.constant 0 : i32
    return %c0_i32, %arg0 : i32, i32
  }
  func.func @transform_3(%arg0: i32) -> (i32, i32) {
    %c0_i32 = arith.constant 0 : i32
    %c0_i32_0 = arith.constant 0 : i32
    return %c0_i32, %arg0 : i32, i32
  }
}

</mosaic_0001>

<llo_original>
// kernel: tpu_custom_call.1
$region0: #{tpu_custom_call.1}
  #allocation0 [shape = 'u32[]', space=smem, size = 0x4, offset = 0x4, fixed_abs, tag = 'smem constant byte address 0x4 - core index']
  #allocation1 [shape = 'u32[144,128]{1,0:T(1,128)}', space=vmem, size = 0x12000, scoped, tag = 'internal scratch']
  %s0 = inlined_call_operand.hbm [shape: f32[2,32], index: 0, kind: input, shape index: {}]
  %s1 = inlined_call_operand.hbm [shape: f32[32,32], index: 1, kind: input, shape index: {}]
  %s2 = inlined_call_operand.vmem [shape: f32[1,32], index: 2, kind: input, shape index: {}]
  %s3 = inlined_call_operand.hbm [shape: f32[2,32], index: 3, kind: output, shape index: {}]
  %s4 = sld [smem:[#allocation0]]
  $region30: #{tpu_custom_call.1} parent=0
    _
  %s6 = ssub.s32 1, %s4
  %s7 = scalar_select 0, %s6, %s4
  $region1: #{tpu_custom_call.1} parent=0
    #allocation2 [shape = 'u8[1024]{0}', space=vmem, size = 0x400, scoped, tag = 'input window, operand 0, single buffered']
    #allocation3 [shape = 's32[1]{0}', space=sflag, size = 0x4, scoped, tag = 'scoped memory for tpu_custom_call.1']
    #allocation4 [shape = 's32[1]{0}', space=sflag, size = 0x4, scoped, tag = 'scoped memory for tpu_custom_call.1']
    #allocation5 [shape = 'u8[16384]{0}', space=vmem, size = 0x4000, scoped, tag = 'input window, operand 1, single buffered']
    #allocation6 [shape = 's32[1]{0}', space=sflag, size = 0x4, scoped, tag = 'scoped memory for tpu_custom_call.1']
    #allocation7 [shape = 'u8[1024]{0}', space=vmem, size = 0x400, scoped, tag = 'output window, operand 0, single buffered']
    %8 = vsyncpa [#allocation3], 0
    %9 = vsyncpa [#allocation6], 0
    %10 = vsyncpa [#allocation4], 0
    // Predicated region
    $region2: #{tpu_custom_call.1} parent=1 // pred_check
      _
    $region3: #{tpu_custom_call.1} parent=1 // pred_check_branch
      %12 = sbr.rel (0) target = $region5
    $region4: #{tpu_custom_call.1} parent=1 // pred_region
      %s14 = ssub.s32 32, 32
      %15 = vsyncadd [#allocation3], %s14
      %s17 = sshll.u32 [#allocation2], 4
      %s18 = int_to_ptr.vmem [resolvable:$true] %s17
      %20 = dma.hbm_to_vmem [thread:$0]  %s0, 32, %s18, [#allocation3]
    $region5: #{tpu_custom_call.1} parent=1 // pred_fallthru
      _
    // Predicated region
    $region6: #{tpu_custom_call.1} parent=1 // pred_check
      _
    $region7: #{tpu_custom_call.1} parent=1 // pred_check_branch
      %22 = sbr.rel (0) target = $region9
    $region8: #{tpu_custom_call.1} parent=1 // pred_region
      %s24 = ssub.s32 512, 512
      %25 = vsyncadd [#allocation6], %s24
      %s26 = sshll.u32 [#allocation5], 4
      %s27 = int_to_ptr.vmem [resolvable:$true] %s26
      %32 = dma.hbm_to_vmem [thread:$0]  %s1, 512, %s27, [#allocation6], 128, 128, 8
    $region9: #{tpu_custom_call.1} parent=1 // pred_fallthru
      _
    // Predicated region
    $region10: #{tpu_custom_call.1} parent=1 // pred_check
      _
    $region11: #{tpu_custom_call.1} parent=1 // pred_check_branch
      %34 = sbr.rel (0) target = $region13
    $region12: #{tpu_custom_call.1} parent=1 // pred_region
      _
    $region13: #{tpu_custom_call.1} parent=1 // pred_fallthru
      _
    // Predicated region
    $region14: #{tpu_custom_call.1} parent=1 // pred_check
      _
    $region15: #{tpu_custom_call.1} parent=1 // pred_check_branch
      %36 = sbr.rel (0) target = $region17
    $region16: #{tpu_custom_call.1} parent=1 // pred_region
      %37 = dma.done [#allocation3], 32
    $region17: #{tpu_custom_call.1} parent=1 // pred_fallthru
      _
    // Predicated region
    $region18: #{tpu_custom_call.1} parent=1 // pred_check
      _
    $region19: #{tpu_custom_call.1} parent=1 // pred_check_branch
      %39 = sbr.rel (0) target = $region21
    $region20: #{tpu_custom_call.1} parent=1 // pred_region
      %40 = dma.done [#allocation6], 512
    $region21: #{tpu_custom_call.1} parent=1 // pred_fallthru
      _
    %v41 = vld [vmem:[#allocation2] sm:$0x3]
    %v42 = vld [vmem:[#allocation5] sm:$0xff]
    %v43 = vld [vmem:[#allocation5 + $0x8] sm:$0xff]
    %v44 = vld [vmem:[#allocation5 + $0x10] sm:$0xff]
    %v45 = vld [vmem:[#allocation5 + $0x18] sm:$0xff]
    %v46 = vld [vmem:[%s2] sm:$0x1]
    %v48 = vlaneseq
    %v49 = vshrl.u32 %v48, 7
    %v50 = vsub.s32 0, %v49
    %v51 = vrot.slane %v46, %v50
    %vm53 = vcmask 261120
    %v55 = vsel %vm53, %v41, 0
    %v58 = vsel %vm53, %v42, 0
    %v61 = vsel %vm53, %v43, 0
    %v64 = vsel %vm53, %v44, 0
    %v67 = vsel %vm53, %v45, 0
    %69 = vmatprep.subr.mxu0 0.0
    %70 = vmatpush1.xpose.msra.mxu0 0.0
    %71 = vmatprep.subr.mxu0 0.0
    %72 = vmatpush1.xpose.msra.mxu0 0.0
    %73 = vmatprep.subr.mxu0 0.0
    %74 = vmatpush1.xpose.msra.mxu0 0.0
    %75 = vmatprep.subr.mxu0 0.0
    %76 = vmatpush1.xpose.msra.mxu0 0.0
    %77 = vmatprep.subr.mxu0 0.0
    %78 = vmatpush1.xpose.msra.mxu0 0.0
    %79 = vmatprep.subr.mxu0 0.0
    %80 = vmatpush1.xpose.msra.mxu0 0.0
    %81 = vmatprep.subr.mxu0 0.0
    %82 = vmatpush1.xpose.msra.mxu0 0.0
    %83 = vmatprep.subr.mxu0 0.0
    %84 = vmatpush1.xpose.msra.mxu0 0.0
    %85 = vmatprep.subr.mxu0 0.0
    %86 = vmatpush1.xpose.msra.mxu0 0.0
    %87 = vmatprep.subr.mxu0 0.0
    %88 = vmatpush1.xpose.msra.mxu0 0.0
    %89 = vmatprep.subr.mxu0 0.0
    %90 = vmatpush1.xpose.msra.mxu0 0.0
    %91 = vmatprep.subr.mxu0 0.0
    %92 = vmatpush1.xpose.msra.mxu0 0.0
    %93 = vmatprep.subr.mxu0 0.0
    %94 = vmatpush1.xpose.msra.mxu0 %v67
    %95 = vmatprep.subr.mxu0 0.0
    %96 = vmatpush1.xpose.msra.mxu0 %v64
    %97 = vmatprep.subr.mxu0 0.0
    %98 = vmatpush1.xpose.msra.mxu0 %v61
    %99 = vmatprep.subr.mxu0 0.0
    %100 = vmatpush1.xpose.msra.mxu0 %v58
    %101 = vmatprep.subr.mxu0 0.0
    %102 = vmatpush2.xpose.msra.mxu0 0.0
    %103 = vmatprep.subr.mxu0 0.0
    %104 = vmatpush2.xpose.msra.mxu0 0.0
    %105 = vmatprep.subr.mxu0 0.0
    %106 = vmatpush2.xpose.msra.mxu0 0.0
    %107 = vmatprep.subr.mxu0 0.0
    %108 = vmatpush2.xpose.msra.mxu0 0.0
    %109 = vmatprep.subr.mxu0 0.0
    %110 = vmatpush2.xpose.msra.mxu0 0.0
    %111 = vmatprep.subr.mxu0 0.0
    %112 = vmatpush2.xpose.msra.mxu0 0.0
    %113 = vmatprep.subr.mxu0 0.0
    %114 = vmatpush2.xpose.msra.mxu0 0.0
    %115 = vmatprep.subr.mxu0 0.0
    %116 = vmatpush2.xpose.msra.mxu0 0.0
    %117 = vmatprep.subr.mxu0 0.0
    %118 = vmatpush2.xpose.msra.mxu0 0.0
    %119 = vmatprep.subr.mxu0 0.0
    %120 = vmatpush2.xpose.msra.mxu0 0.0
    %121 = vmatprep.subr.mxu0 0.0
    %122 = vmatpush2.xpose.msra.mxu0 0.0
    %123 = vmatprep.subr.mxu0 0.0
    %124 = vmatpush2.xpose.msra.mxu0 0.0
    %125 = vmatprep.subr.mxu0 0.0
    %126 = vmatpush2.xpose.msra.mxu0 0.0
    %127 = vmatprep.subr.mxu0 0.0
    %128 = vmatpush2.xpose.msra.mxu0 0.0
    %129 = vmatprep.subr.mxu0 0.0
    %130 = vmatpush2.xpose.msra.mxu0 0.0
    %131 = vmatprep.subr.mxu0 0.0
    %132 = vmatpush2.xpose.msra.mxu0 0.0
    %133 = vmatprep.mubr.f32.mxu0 0.0
    %134 = vmatmul.mubr.f32.gmra.mxu0 %v55
    %v135 = vpop.f32.mrf.mxu0
    %v136 = vadd.f32 %v51, %v135
    %v137 = vpop.f32.mrf.mxu0
    %138 = vdwg.mxu0
    %v139 = vtanh.pop %v136
    %vm140 = vcmask 254976
    %141 = vst.msk [vmem:[#allocation7] sm:$0x3] %vm140, %v139
    // Predicated region
    $region22: #{tpu_custom_call.1} parent=1 // pred_check
      _
    $region23: #{tpu_custom_call.1} parent=1 // pred_check_branch
      %143 = sbr.rel (0) target = $region25
    $region24: #{tpu_custom_call.1} parent=1 // pred_region
      %s145 = ssub.s32 32, 32
      %146 = vsyncadd [#allocation4], %s145
      %s148 = sshll.u32 [#allocation7], 4
      %s149 = int_to_ptr.vmem [resolvable:$true] %s148
      %151 = dma.vmem_to_hbm [thread:$0]  %s149, 32, %s3, [#allocation4]
    $region25: #{tpu_custom_call.1} parent=1 // pred_fallthru
      _
    // Predicated region
    $region26: #{tpu_custom_call.1} parent=1 // pred_check
      _
    $region27: #{tpu_custom_call.1} parent=1 // pred_check_branch
      %153 = sbr.rel (0) target = $region29
    $region28: #{tpu_custom_call.1} parent=1 // pred_region
      %154 = dma.done [#allocation4], 32
    $region29: #{tpu_custom_call.1} parent=1 // pred_fallthru
      _
    %155 = vsyncpa [#allocation3], 1
    %156 = vsyncpa [#allocation6], 1
    %157 = vsyncpa [#allocation4], 1

</llo_original>
